<compile_context>
chip_gen: v7x
topology: tpu7x:2x2x1
jax: 0.10.0
libtpu: 0.0.40
codegen_flags: <defaults>
</compile_context>

<pallas_src>
import jax
import jax.numpy as jnp
from jax.experimental import pallas as pl
from jax.experimental.pallas import tpu as pltpu

_LANE = 128      # vreg lane width
_SUBLANE = 8     # f32 sublane count
# Below one full (8,128) vreg of data the custom-call dispatch dominates;
# skip Pallas entirely (deliberately conservative so moderate N still
# exercises the kernel — raise freely in production).
_FAST_PATH_MAX_ELEMS = _SUBLANE * _LANE


def _linear_kernel(wb_ref, x_ref, o_ref):
    # wb_ref: SMEM (2,) f32 -> [w, b];  x_ref/o_ref: VMEM (tile_rows, 128) f32
    # y = x * W[0,0] + b[0]  ==  x @ W.T + b  for a 1->1 Linear (VPU only).
    o_ref[...] = x_ref[...] * wb_ref[0] + wb_ref[1]


def _linear_pallas_2d(x2, wb, *, block_rows):
    """Run the kernel on a lane-dense (rows, 128) f32 view."""
    rows = x2.shape[0]
    if rows <= block_rows:
        tile_rows = rows                       # single full-extent block (always valid)
    else:
        tile_rows = block_rows                 # multiple of 8 -> valid (8,128) tiling
    grid = (pl.cdiv(rows, tile_rows),)         # Pallas masks the ragged last block

    return pl.pallas_call(
        _linear_kernel,
        out_shape=jax.ShapeDtypeStruct((rows, _LANE), x2.dtype),
        grid_spec=pltpu.PrefetchScalarGridSpec(
            num_scalar_prefetch=0,
            grid=grid,
            in_specs=[
                pl.BlockSpec(memory_space=pltpu.MemorySpace.SMEM),   # [w, b] (2,)
                pl.BlockSpec((tile_rows, _LANE), lambda i: (i, 0)),  # x tile
            ],
            out_specs=pl.BlockSpec((tile_rows, _LANE), lambda i: (i, 0)),
        ),
        compiler_params=pltpu.CompilerParams(
            dimension_semantics=("parallel",),   # v7x: shard tiles across both TCs
        ),
    )(wb, x2)


def manual_linear_regression(x, weight, bias, *, block_rows=4096, force_pallas=False):
    """x: (N, 1) f32, weight: (1, 1) f32, bias: (1,) f32 -> (N, 1) f32."""
    n, f = x.shape
    assert f == 1 and weight.shape == (1, 1) and bias.shape == (1,)
    assert x.dtype == jnp.float32, "tiling assumes f32 (8,128) vregs"

    # Small-N fast path: a fused XLA elementwise op beats kernel dispatch.
    if not force_pallas and n < _FAST_PATH_MAX_ELEMS:
        return x * weight[0, 0] + bias[0]

    # Pack the two scalars into a single 1-D SMEM operand (pads to 8 bytes).
    wb = jnp.concatenate([weight.reshape(-1), bias.reshape(-1)])   # (2,) f32

    rows = pl.cdiv(n, _LANE)
    # Round the tile up to a sublane multiple so the tiled path always lowers.
    block_rows = max(_SUBLANE, ((block_rows + _SUBLANE - 1) // _SUBLANE) * _SUBLANE)

    if n % _LANE == 0:
        # Common case: (n,1) -> (rows,128) and back are free bitcasts; the only
        # HBM traffic is the kernel's own read + write.
        out2 = _linear_pallas_2d(x.reshape(rows, _LANE), wb, block_rows=block_rows)
        return out2.reshape(n, 1)

    # Ragged N: pad only the <=127-element tail up to a whole lane row.
    # TODO(synk): the pad and the [:n] slice are still whole-tensor XLA copies
    # for ragged N; a prefix-kernel + tail-in-JAX split costs about the same,
    # so callers should prefer lane-aligned N when this matters.
    padded = rows * _LANE
    x2 = jnp.pad(x.reshape(-1), (0, padded - n)).reshape(rows, _LANE)
    out2 = _linear_pallas_2d(x2, wb, block_rows=block_rows)
    return out2.reshape(-1)[:n].reshape(n, 1)


if __name__ == "__main__":
    key = jax.random.PRNGKey(0)
    kx, kw, kb, kx2, kx3 = jax.random.split(key, 5)

    # Parameters mimicking nn.Linear(1, 1) default init:
    # uniform in [-1/sqrt(in_features), 1/sqrt(in_features)] = [-1, 1].
    weight = jax.random.uniform(kw, (1, 1), dtype=jnp.float32, minval=-1.0, maxval=1.0)
    bias = jax.random.uniform(kb, (1,), dtype=jnp.float32, minval=-1.0, maxval=1.0)

    # 1) Input matching the reference script: x = np.random.rand(100, 1).
    #    (a) default path (small-N fast path), (b) forced through the Pallas
    #    kernel to exercise the ragged-tail padding branch.
    x = jax.random.uniform(kx, (100, 1), dtype=jnp.float32)
    y_ref = x @ weight.T + bias
    y_fast = jax.block_until_ready(manual_linear_regression(x, weight, bias))
    y_krnl = jax.block_until_ready(
        manual_linear_regression(x, weight, bias, force_pallas=True)
    )
    assert y_fast.shape == (100, 1) and y_krnl.shape == (100, 1)
    assert jnp.allclose(y_fast, y_ref, atol=1e-6, rtol=1e-6)
    assert jnp.allclose(y_krnl, y_ref, atol=1e-6, rtol=1e-6)

    # 2) Lane-aligned input, small tile -> multi-block pipelined path
    #    (zero-copy reshape, dividing grid of 2 tiles of (8, 128)).
    x_big = jax.random.uniform(kx2, (2048, 1), dtype=jnp.float32)
    y_big = jax.block_until_ready(
        manual_linear_regression(x_big, weight, bias, block_rows=8)
    )
    assert y_big.shape == (2048, 1)
    assert jnp.allclose(y_big, x_big @ weight.T + bias, atol=1e-6, rtol=1e-6)

    # 3) Ragged, non-dividing grid: rows=17, tile=8 -> 3 blocks, masked last block.
    x_rag = jax.random.uniform(kx3, (2050, 1), dtype=jnp.float32)
    y_rag = jax.block_until_ready(
        manual_linear_regression(x_rag, weight, bias, block_rows=8)
    )
    assert y_rag.shape == (2050, 1)
    assert jnp.allclose(y_rag, x_rag @ weight.T + bias, atol=1e-6, rtol=1e-6)

    # 4) Large lane-aligned input with the default 4096-row tiles
    #    (grid of 2 x 2 MiB blocks — the intended steady-state configuration).
    x_huge = jax.random.uniform(key, (1 << 20, 1), dtype=jnp.float32)
    y_huge = jax.block_until_ready(manual_linear_regression(x_huge, weight, bias))
    assert y_huge.shape == (1 << 20, 1)
    assert jnp.allclose(y_huge, x_huge @ weight.T + bias, atol=1e-6, rtol=1e-6)

    print("KERNEL_OK")
</pallas_src>

<mosaic_0001>
module attributes {stable_mosaic.version = 11 : i64} {
  func.func @_linear_kernel(%arg0: i32, %arg1: memref<2xf32, #tpu.memory_space<smem>>, %arg2: memref<1x128xf32, #tpu.memory_space<vmem>>, %arg3: memref<1x128xf32, #tpu.memory_space<vmem>>) attributes {dimension_semantics = [#tpu.dimension_semantics<parallel>], iteration_bounds = array<i64: 1>, scalar_prefetch = 0 : i64, scratch_operands = 0 : i64, tpu.core_type = #tpu.core_type<tc>, window_params = [{transform_indices = @transform_0, window_bounds = array<i64: 2>}, {transform_indices = @transform_1, window_bounds = array<i64: 1, 128>}, {transform_indices = @transform_2, window_bounds = array<i64: 1, 128>}]} {
    %c0 = arith.constant 0 : index
    %c0_0 = arith.constant 0 : index
    %0 = vector.load %arg2[%c0, %c0_0] : memref<1x128xf32, #tpu.memory_space<vmem>>, vector<1x128xf32>
    %c0_1 = arith.constant 0 : index
    %1 = memref.load %arg1[%c0_1] : memref<2xf32, #tpu.memory_space<smem>>
    %2 = vector.broadcast %1 : f32 to vector<1x128xf32>
    %3 = arith.mulf %0, %2 : vector<1x128xf32>
    %c1 = arith.constant 1 : index
    %4 = memref.load %arg1[%c1] : memref<2xf32, #tpu.memory_space<smem>>
    %5 = vector.broadcast %4 : f32 to vector<1x128xf32>
    %6 = arith.addf %3, %5 : vector<1x128xf32>
    %c0_2 = arith.constant 0 : index
    %c0_3 = arith.constant 0 : index
    %7 = vector.load %arg3[%c0_2, %c0_3] : memref<1x128xf32, #tpu.memory_space<vmem>>, vector<1x128xf32>
    tpu.vector_store %arg3[%c0_2, %c0_3], %6 {strides = array<i32>} : memref<1x128xf32, #tpu.memory_space<vmem>>, vector<1x128xf32>,
    return
  }
  func.func @transform_0(%arg0: i32) -> i32 {
    %c0_i32 = arith.constant 0 : i32
    %c0_i32_0 = arith.constant 0 : i32
    return %c0_i32 : i32
  }
  func.func @transform_1(%arg0: i32) -> (i32, i32) {
    %c0_i32 = arith.constant 0 : i32
    %c0_i32_0 = arith.constant 0 : i32
    return %arg0, %c0_i32 : i32, i32
  }
  func.func @transform_2(%arg0: i32) -> (i32, i32) {
    %c0_i32 = arith.constant 0 : i32
    %c0_i32_0 = arith.constant 0 : i32
    return %arg0, %c0_i32 : i32, i32
  }
}

</mosaic_0001>

<llo_original>
// kernel: tpu_custom_call.1
$region0: #{tpu_custom_call.1}
  #allocation0 [shape = 'u32[]', space=smem, size = 0x4, offset = 0x4, fixed_abs, tag = 'smem constant byte address 0x4 - core index']
  #allocation1 [shape = 'u32[144,128]{1,0:T(1,128)}', space=vmem, size = 0x12000, scoped, tag = 'internal scratch']
  %s0 = inlined_call_operand.hbm [shape: f32[2], index: 0, kind: input, shape index: {}]
  %s1 = inlined_call_operand.vmem [shape: f32[1,128], index: 1, kind: input, shape index: {}]
  %s2 = inlined_call_operand.hbm [shape: f32[1,128], index: 2, kind: output, shape index: {}]
  %s3 = sld [smem:[#allocation0]]
  $region22: #{tpu_custom_call.1} parent=0
    _
  %s5 = ssub.s32 1, %s3
  %s6 = scalar_select 0, %s5, %s3
  $region1: #{tpu_custom_call.1} parent=0
    #allocation2 [shape = 'u8[512]{0}', space=smem, size = 0x200, scoped, tag = 'input window, operand 0, single buffered']
    #allocation3 [shape = 's32[1]{0}', space=sflag, size = 0x4, scoped, tag = 'scoped memory for tpu_custom_call.1']
    #allocation4 [shape = 's32[1]{0}', space=sflag, size = 0x4, scoped, tag = 'scoped memory for tpu_custom_call.1']
    #allocation5 [shape = 'u8[512]{0}', space=vmem, size = 0x400, scoped, tag = 'output window, operand 0, single buffered']
    %7 = vsyncpa [#allocation4], 0
    %8 = vsyncpa [#allocation3], 0
    // Predicated region
    $region2: #{tpu_custom_call.1} parent=1 // pred_check
      _
    $region3: #{tpu_custom_call.1} parent=1 // pred_check_branch
      %10 = sbr.rel (0) target = $region5
    $region4: #{tpu_custom_call.1} parent=1 // pred_region
      %s12 = ssub.s32 16, 16
      %13 = vsyncadd [#allocation4], %s12
      %16 = dma.hbm_to_smem %s0, 16, [#allocation2], [#allocation4]
    $region5: #{tpu_custom_call.1} parent=1 // pred_fallthru
      _
    // Predicated region
    $region6: #{tpu_custom_call.1} parent=1 // pred_check
      _
    $region7: #{tpu_custom_call.1} parent=1 // pred_check_branch
      %18 = sbr.rel (0) target = $region9
    $region8: #{tpu_custom_call.1} parent=1 // pred_region
      _
    $region9: #{tpu_custom_call.1} parent=1 // pred_fallthru
      _
    // Predicated region
    $region10: #{tpu_custom_call.1} parent=1 // pred_check
      _
    $region11: #{tpu_custom_call.1} parent=1 // pred_check_branch
      %20 = sbr.rel (0) target = $region13
    $region12: #{tpu_custom_call.1} parent=1 // pred_region
      %21 = dma.done [#allocation4], 16
    $region13: #{tpu_custom_call.1} parent=1 // pred_fallthru
      _
    %22 = sfence
    %v23 = vld [vmem:[%s1] sm:$0x1]
    %s24 = sld [smem:[#allocation2]]
    %v25 = vstv %s24
    %v26 = vmul.f32 %v23, %v25
    %s27 = sld [smem:[#allocation2 + $0x1]]
    %v28 = vstv %s27
    %v29 = vadd.f32 %v26, %v28
    %30 = vst [vmem:[#allocation5] sm:$0x1] %v29
    // Predicated region
    $region14: #{tpu_custom_call.1} parent=1 // pred_check
      _
    $region15: #{tpu_custom_call.1} parent=1 // pred_check_branch
      %32 = sbr.rel (0) target = $region17
    $region16: #{tpu_custom_call.1} parent=1 // pred_region
      %s34 = ssub.s32 16, 16
      %35 = vsyncadd [#allocation3], %s34
      %s37 = sshll.u32 [#allocation5], 4
      %s38 = int_to_ptr.vmem [resolvable:$true] %s37
      %40 = dma.vmem_to_hbm [thread:$0]  %s38, 16, %s2, [#allocation3]
    $region17: #{tpu_custom_call.1} parent=1 // pred_fallthru
      _
    // Predicated region
    $region18: #{tpu_custom_call.1} parent=1 // pred_check
      _
    $region19: #{tpu_custom_call.1} parent=1 // pred_check_branch
      %42 = sbr.rel (0) target = $region21
    $region20: #{tpu_custom_call.1} parent=1 // pred_region
      %43 = dma.done [#allocation3], 16
    $region21: #{tpu_custom_call.1} parent=1 // pred_fallthru
      _
    %44 = vsyncpa [#allocation3], 1
    %45 = vsyncpa [#allocation4], 1

</llo_original>
